<compile_context>
chip_gen: v7x
topology: tpu7x:2x2x1
jax: 0.10.0
libtpu: 0.0.40
codegen_flags: <defaults>
</compile_context>

<pallas_src>
import jax
import jax.numpy as jnp
from jax import lax
from jax.experimental import pallas as pl
from jax.experimental.pallas import tpu as pltpu


def mlp_layer_kernel(x_ref, w_ref, b_ref, o_ref):
    # x_ref: (TB, H_in)   w_ref: (TN, H_in)  (PyTorch layout, untransposed)
    # b_ref: (1, TN)      o_ref: (TB, TN)
    # Transposed-RHS contraction -> MXU matmul, f32 accumulation, no transpose.
    y = lax.dot_general(
        x_ref[...], w_ref[...],
        dimension_numbers=(((1,), (1,)), ((), ())),
        preferred_element_type=jnp.float32)
    y = y + b_ref[...].astype(jnp.float32)        # VPU (hidden under MXU/DMA)
    o_ref[...] = jnp.tanh(y).astype(o_ref.dtype)  # EUP (separate issue slot)


def _vmem_budget_bytes():
    # ~75% of physical VMEM: leaves room for compiler scratch / semaphores.
    cap = 64 * 2**20  # conservative default = v7x per-TensorCore VMEM
    try:
        info = pltpu.get_tpu_info()
        cap = int(getattr(info, "vmem_capacity_bytes", cap))
    except Exception:
        pass
    return (cap * 3) // 4


def mlp_layer(features, weight, bias, *, tile_b=128, tile_n=512, use_bf16=False):
    """out = tanh(features @ weight.T + bias)

    features: [B, H_in]; weight: [H_out, H_in] (nn.Linear layout, used as-is);
    bias: [H_out].  Returns [B, H_out] in features.dtype.
    """
    B, H_in = features.shape
    H_out, H_in_w = weight.shape
    assert H_in_w == H_in
    assert bias.shape == (H_out,)

    out_dtype = features.dtype
    x = features
    w = weight
    if use_bf16:
        x = x.astype(jnp.bfloat16)
        # For production, pass an already-bf16 weight (cast cached caller-side)
        # so this is a no-op instead of an H_out*H_in HBM round trip per call.
        w = w.astype(jnp.bfloat16)
    bias2d = bias.reshape(1, H_out).astype(jnp.float32)

    in_b = jnp.dtype(x.dtype).itemsize
    w_b = jnp.dtype(w.dtype).itemsize
    out_b = jnp.dtype(out_dtype).itemsize

    # --- batch tile (pad instead of asserting divisibility) -----------------
    min_sub = 16 if use_bf16 else 8        # bf16 packs 2 rows per sublane
    tb = min(tile_b, B)
    tb = max(min_sub, ((tb + min_sub - 1) // min_sub) * min_sub)
    b_pad = pl.cdiv(B, tb) * tb
    if b_pad != B:
        x = jnp.pad(x, ((0, b_pad - B), (0, 0)))

    # --- output-column strip tn, sized under the VMEM budget ----------------
    budget = _vmem_budget_bytes()
    x_bytes = 2 * in_b * tb * H_in                         # double-buffered LHS
    per_col = 2 * w_b * H_in + 2 * out_b * tb + 2 * 4      # per output column
    col_budget = max(budget - x_bytes, 128 * per_col)
    tn = H_out                                             # fallback (small/odd H)
    start = (min(tile_n, H_out) // 128) * 128
    for cand in range(start, 127, -128):
        if H_out % cand == 0 and per_col * cand <= col_budget:
            tn = cand
            break
    # TODO(synk): for very large H where even tn=128 (or a non-128-divisible
    # H_out forcing tn=H_out) overflows VMEM, add a K-reduction grid axis
    # ("arbitrary") with an f32 VMEM accumulator and pl.when init/finalize.

    need = x_bytes + 2 * w_b * H_in * tn + 2 * 4 * tn + 2 * out_b * tb * tn
    vmem_limit = int(min(max(2 * need, 8 * 2**20), budget))

    # Weight strip is the OUTER axis, batch the INNER one: the weight/bias
    # block indices are constant across consecutive inner steps, so Pallas
    # DMAs each (tn, H_in) strip from HBM exactly once.
    grid = (H_out // tn, b_pad // tb)

    out = pl.pallas_call(
        mlp_layer_kernel,
        out_shape=jax.ShapeDtypeStruct((b_pad, H_out), out_dtype),
        grid_spec=pl.GridSpec(
            grid=grid,
            in_specs=[
                pl.BlockSpec((tb, H_in), lambda j, i: (i, 0)),   # x row tile
                pl.BlockSpec((tn, H_in), lambda j, i: (j, 0)),   # weight strip
                pl.BlockSpec((1, tn), lambda j, i: (0, j)),      # bias strip
            ],
            out_specs=pl.BlockSpec((tb, tn), lambda j, i: (i, j)),
        ),
        compiler_params=pltpu.CompilerParams(
            dimension_semantics=("parallel", "parallel"),
            vmem_limit_bytes=vmem_limit,
        ),
    )(x, w, bias2d)

    return out[:B]


if __name__ == "__main__":
    # CLS representations [batch, hidden]; batch deliberately NOT a multiple
    # of the batch tile to exercise the padding path; tile_n=128 gives 2
    # weight strips x 2 batch tiles to exercise the strip-outer grid order.
    batch, hidden = 200, 256

    key = jax.random.PRNGKey(0)
    k_x, k_w, k_b = jax.random.split(key, 3)

    features = jax.random.normal(k_x, (batch, hidden), dtype=jnp.float32)
    weight = jax.random.normal(k_w, (hidden, hidden), dtype=jnp.float32) * 0.02
    bias = jax.random.normal(k_b, (hidden,), dtype=jnp.float32) * 0.02

    # Reference (same math as PyTorch nn.Linear + Tanh).
    ref = jnp.tanh(features @ weight.T + bias)

    # f32 path.
    out = jax.block_until_ready(
        mlp_layer(features, weight, bias, tile_b=128, tile_n=128))
    assert out.shape == (batch, hidden)
    assert jnp.allclose(out, ref, atol=1e-5, rtol=1e-5)

    # bf16-operand path: weight pre-cast ONCE caller-side (cached), f32 accum.
    weight_bf16 = weight.astype(jnp.bfloat16)
    out_bf16 = jax.block_until_ready(
        mlp_layer(features, weight_bf16, bias, tile_b=128, tile_n=128,
                  use_bf16=True))
    assert out_bf16.shape == (batch, hidden)
    assert jnp.allclose(out_bf16, ref, atol=5e-2, rtol=5e-2)

    print("KERNEL_OK")
</pallas_src>

<mosaic_0001>
module attributes {stable_mosaic.version = 11 : i64} {
  func.func @mlp_layer_kernel(%arg0: i32, %arg1: i32, %arg2: memref<128x256xf32, #tpu.memory_space<vmem>>, %arg3: memref<128x256xf32, #tpu.memory_space<vmem>>, %arg4: memref<1x128xf32, #tpu.memory_space<vmem>>, %arg5: memref<128x128xf32, #tpu.memory_space<vmem>>) attributes {dimension_semantics = [#tpu.dimension_semantics<parallel>, #tpu.dimension_semantics<parallel>], iteration_bounds = array<i64: 2, 2>, scalar_prefetch = 0 : i64, scratch_operands = 0 : i64, tpu.core_type = #tpu.core_type<tc>, window_params = [{transform_indices = @transform_0, window_bounds = array<i64: 128, 256>}, {transform_indices = @transform_1, window_bounds = array<i64: 128, 256>}, {transform_indices = @transform_2, window_bounds = array<i64: 1, 128>}, {transform_indices = @transform_3, window_bounds = array<i64: 128, 128>}]} {
    %c0 = arith.constant 0 : index
    %c0_0 = arith.constant 0 : index
    %0 = vector.load %arg2[%c0, %c0_0] : memref<128x256xf32, #tpu.memory_space<vmem>>, vector<128x256xf32>
    %c0_1 = arith.constant 0 : index
    %c0_2 = arith.constant 0 : index
    %1 = vector.load %arg3[%c0_1, %c0_2] : memref<128x256xf32, #tpu.memory_space<vmem>>, vector<128x256xf32>
    %cst = arith.constant dense<0.000000e+00> : vector<128x128xf32>
    %2 = tpu.matmul %0, %1, %cst {dimension_numbers = #tpu.dot_dimension_numbers<[1], [1], [0], [0], [0, 0, 1, 0], [], []>} : vector<128x256xf32>, vector<128x256xf32>, vector<128x128xf32> -> vector<128x128xf32>
    %c0_3 = arith.constant 0 : index
    %c0_4 = arith.constant 0 : index
    %3 = vector.load %arg4[%c0_3, %c0_4] : memref<1x128xf32, #tpu.memory_space<vmem>>, vector<1x128xf32>
    %4 = vector.broadcast %3 : vector<1x128xf32> to vector<128x128xf32>
    %5 = arith.addf %2, %4 : vector<128x128xf32>
    %6 = math.tanh %5 : vector<128x128xf32>
    %c0_5 = arith.constant 0 : index
    %c0_6 = arith.constant 0 : index
    %7 = vector.load %arg5[%c0_5, %c0_6] : memref<128x128xf32, #tpu.memory_space<vmem>>, vector<128x128xf32>
    tpu.vector_store %arg5[%c0_5, %c0_6], %6 {strides = array<i32>} : memref<128x128xf32, #tpu.memory_space<vmem>>, vector<128x128xf32>,
    return
  }
  func.func @transform_0(%arg0: i32, %arg1: i32) -> (i32, i32) {
    %c0_i32 = arith.constant 0 : i32
    %c0_i32_0 = arith.constant 0 : i32
    return %arg1, %c0_i32 : i32, i32
  }
  func.func @transform_1(%arg0: i32, %arg1: i32) -> (i32, i32) {
    %c0_i32 = arith.constant 0 : i32
    %c0_i32_0 = arith.constant 0 : i32
    return %arg0, %c0_i32 : i32, i32
  }
  func.func @transform_2(%arg0: i32, %arg1: i32) -> (i32, i32) {
    %c0_i32 = arith.constant 0 : i32
    %c0_i32_0 = arith.constant 0 : i32
    return %c0_i32, %arg0 : i32, i32
  }
  func.func @transform_3(%arg0: i32, %arg1: i32) -> (i32, i32) {
    %c0_i32 = arith.constant 0 : i32
    return %arg1, %arg0 : i32, i32
  }
}

</mosaic_0001>

<llo_original>
// kernel: tpu_custom_call.1
$region0: #{tpu_custom_call.1}
  #allocation0 [shape = 'u32[]', space=smem, size = 0x4, offset = 0x4, fixed_abs, tag = 'smem constant byte address 0x4 - core index']
  #allocation1 [shape = 'u32[144,128]{1,0:T(1,128)}', space=vmem, size = 0x12000, scoped, tag = 'internal scratch']
  %s0 = inlined_call_operand.hbm [shape: f32[256,256], index: 0, kind: input, shape index: {}]
  %s1 = inlined_call_operand.hbm [shape: f32[256,256], index: 1, kind: input, shape index: {}]
  %s2 = inlined_call_operand.vmem [shape: f32[1,256], index: 2, kind: input, shape index: {}]
  %s3 = inlined_call_operand.hbm [shape: f32[256,256], index: 3, kind: output, shape index: {}]
  %s4 = sld [smem:[#allocation0]]
  $region53: #{tpu_custom_call.1} parent=0
    _
  %s6 = ssub.s32 1, %s4
  %s7 = scalar_select 0, %s6, %s4
  $region1: #{tpu_custom_call.1} parent=0
    #allocation2 [shape = 'u8[262144]{0}', space=vmem, size = 0x40000, scoped, tag = 'input window, operand 0']
    #allocation3 [shape = 's32[2]{0}', space=sflag, size = 0x8, scoped, tag = 'scoped memory for tpu_custom_call.1']
    #allocation4 [shape = 's32[2]{0}', space=sflag, size = 0x8, scoped, tag = 'scoped memory for tpu_custom_call.1']
    #allocation5 [shape = 'u8[262144]{0}', space=vmem, size = 0x40000, scoped, tag = 'input window, operand 1']
    #allocation6 [shape = 's32[2]{0}', space=sflag, size = 0x8, scoped, tag = 'scoped memory for tpu_custom_call.1']
    #allocation7 [shape = 'u8[131072]{0}', space=vmem, size = 0x20000, scoped, tag = 'output window, operand 0']
    %8 = vsyncpa [#allocation3], 0
    %s9 = scalar_lea.sflag [#allocation3], 1
    %10 = vsyncpa %s9, 0
    %11 = vsyncpa [#allocation6], 0
    %s12 = scalar_lea.sflag [#allocation6], 1
    %13 = vsyncpa %s12, 0
    %14 = vsyncpa [#allocation4], 0
    %s15 = scalar_lea.sflag [#allocation4], 1
    %16 = vsyncpa %s15, 0
    loop: start=0, step=1, limit=6
    $region2: #{tpu_custom_call.1} parent=1 // loop_pre_header
      _
    $region3: #{tpu_custom_call.1} parent=1 // loop_header
      %s18 = sphi 0, %s22
      %p19 = scmp.ge.s32.totalorder %s18, 6
      %s25 = sphi 0, %s37
      %s26 = sphi 0, %s33
      %s27 = sphi 0, %s25
      %s28 = sphi 0, %s26
      %s29 = sphi 0, %s27
      %s30 = sphi 0, %s28
      %s40 = sphi 0, %s42
      %s43 = sphi 0, %s40
      %s44 = sphi 0, %s43
      %s60 = sphi 0, %s44
      %s66 = sphi 0, %s68
      %s69 = sphi 0, %s66
      %s70 = sphi 0, %s69
      %s86 = sphi 0, %s70
      %s92 = sphi 0, %s94
      %s95 = sphi 0, %s92
      %s96 = sphi 0, %s95
      %s112 = sphi 0, %s96
      %s120 = sphi 0, %s122
      %s123 = sphi 0, %s120
      %s124 = sphi 0, %s123
      %s140 = sphi 0, %s124
    $region4: #{tpu_custom_call.1} parent=1 // loop_header_branch
      %21 = sbr.rel (%p19) target = $region8
    $region5: #{tpu_custom_call.1} parent=1 // loop_body
      %s23 = ssub.s32 %s18, 1
      %s24 = ssub.s32 %s18, 2
      %s31 = sadd.s32 1, %s26
      %p32 = scmp.ge.s32.totalorder %s31, 2
      %s33 = scalar_select %p32, 0, %s31
      %s34 = sadd.s32 1, %s25
      %s35 = scalar_select %p32, %s34, %s25
      %p36 = scmp.ge.s32.totalorder %s35, 2
      %s37 = scalar_select %p36, 0, %s35
      %s38 = ssub.s32 %s26, %s33
      %p39 = scmp.eq.s32.totalorder %s38, 0
      %s41 = sadd.s32 %s40, 1
      %s42 = scalar_select %p39, %s40, %s41
      %p45 = pneg %p39
      %p46 = scmp.eq.s32.totalorder %s18, 3
      %p47 = por %p45, %p46
      %p48 = scmp.ne.s32.totalorder %s40, %s43
      %p49 = scmp.eq.s32.totalorder %s18, 0
      %p50 = por %p48, %p49
      %p51 = scmp.ne.s32.totalorder %s40, %s43
      %p52 = scmp.eq.s32.totalorder %s23, 3
      %p53 = por %p51, %p52
      %p54 = scmp.ne.s32.totalorder %s43, %s44
      %p55 = scmp.eq.s32.totalorder %s23, 0
      %p56 = por %p54, %p55
      %p57 = scmp.ne.s32.totalorder %s43, %s44
      %p58 = scmp.eq.s32.totalorder %s24, 3
      %p59 = por %p57, %p58
      %p61 = scmp.ne.s32.totalorder %s44, %s60
      %p62 = scmp.eq.s32.totalorder %s24, 0
      %p63 = por %p61, %p62
      %s64 = ssub.s32 %s25, %s37
      %p65 = scmp.eq.s32.totalorder %s64, 0
      %s67 = sadd.s32 %s66, 1
      %s68 = scalar_select %p65, %s66, %s67
      %p71 = pneg %p65
      %p72 = scmp.eq.s32.totalorder %s18, 3
      %p73 = por %p71, %p72
      %p74 = scmp.ne.s32.totalorder %s66, %s69
      %p75 = scmp.eq.s32.totalorder %s18, 0
      %p76 = por %p74, %p75
      %p77 = scmp.ne.s32.totalorder %s66, %s69
      %p78 = scmp.eq.s32.totalorder %s23, 3
      %p79 = por %p77, %p78
      %p80 = scmp.ne.s32.totalorder %s69, %s70
      %p81 = scmp.eq.s32.totalorder %s23, 0
      %p82 = por %p80, %p81
      %p83 = scmp.ne.s32.totalorder %s69, %s70
      %p84 = scmp.eq.s32.totalorder %s24, 3
      %p85 = por %p83, %p84
      %p87 = scmp.ne.s32.totalorder %s70, %s86
      %p88 = scmp.eq.s32.totalorder %s24, 0
      %p89 = por %p87, %p88
      %s90 = ssub.s32 %s25, %s37
      %p91 = scmp.eq.s32.totalorder %s90, 0
      %s93 = sadd.s32 %s92, 1
      %s94 = scalar_select %p91, %s92, %s93
      %p97 = pneg %p91
      %p98 = scmp.eq.s32.totalorder %s18, 3
      %p99 = por %p97, %p98
      %p100 = scmp.ne.s32.totalorder %s92, %s95
      %p101 = scmp.eq.s32.totalorder %s18, 0
      %p102 = por %p100, %p101
      %p103 = scmp.ne.s32.totalorder %s92, %s95
      %p104 = scmp.eq.s32.totalorder %s23, 3
      %p105 = por %p103, %p104
      %p106 = scmp.ne.s32.totalorder %s95, %s96
      %p107 = scmp.eq.s32.totalorder %s23, 0
      %p108 = por %p106, %p107
      %p109 = scmp.ne.s32.totalorder %s95, %s96
      %p110 = scmp.eq.s32.totalorder %s24, 3
      %p111 = por %p109, %p110
      %p113 = scmp.ne.s32.totalorder %s96, %s112
      %p114 = scmp.eq.s32.totalorder %s24, 0
      %p115 = por %p113, %p114
      %s116 = ssub.s32 %s26, %s33
      %s117 = ssub.s32 %s25, %s37
      %s118 = sor.u32 %s116, %s117
      %p119 = scmp.eq.s32.totalorder %s118, 0
      %s121 = sadd.s32 %s120, 1
      %s122 = scalar_select %p119, %s120, %s121
      %p125 = pneg %p119
      %p126 = scmp.eq.s32.totalorder %s18, 3
      %p127 = por %p125, %p126
      %p128 = scmp.ne.s32.totalorder %s120, %s123
      %p129 = scmp.eq.s32.totalorder %s18, 0
      %p130 = por %p128, %p129
      %p131 = scmp.ne.s32.totalorder %s120, %s123
      %p132 = scmp.eq.s32.totalorder %s23, 3
      %p133 = por %p131, %p132
      %p134 = scmp.ne.s32.totalorder %s123, %s124
      %p135 = scmp.eq.s32.totalorder %s23, 0
      %p136 = por %p134, %p135
      %p137 = scmp.ne.s32.totalorder %s123, %s124
      %p138 = scmp.eq.s32.totalorder %s24, 3
      %p139 = por %p137, %p138
      %p141 = scmp.ne.s32.totalorder %s124, %s140
      %p142 = scmp.eq.s32.totalorder %s24, 0
      %p143 = por %p141, %p142
      %p144 = scmp.le.s32.totalorder 1, %s18
      %p145 = scmp.lt.s32.totalorder %s18, 5
      %p146 = pnand %p144, %p145
      %p147 = pneg %p146
      // Predicated region
      $region9: #{tpu_custom_call.1} parent=5 // pred_check
        _
      $region10: #{tpu_custom_call.1} parent=5 // pred_check_branch
        %149 = sbr.rel (%p146) target = $region12
      $region11: #{tpu_custom_call.1} parent=5 // pred_region
        %s150 = ssub.s32 %s18, 1
      $region12: #{tpu_custom_call.1} parent=5 // pred_fallthru
        _
      %p151 = scmp.lt.s32.totalorder %s18, 4
      // Predicated region
      $region13: #{tpu_custom_call.1} parent=5 // pred_check
        %p152 = pneg %p151
      $region14: #{tpu_custom_call.1} parent=5 // pred_check_branch
        %154 = sbr.rel (%p152) target = $region16
      $region15: #{tpu_custom_call.1} parent=5 // pred_region
        // Predicated region
        $region17: #{tpu_custom_call.1} parent=15 // pred_check
          %p155 = pneg %p50
        $region18: #{tpu_custom_call.1} parent=15 // pred_check_branch
          %157 = sbr.rel (%p155) target = $region20
        $region19: #{tpu_custom_call.1} parent=15 // pred_region
          %s158 = sand.u32 %s40, 1
          %s159 = scalar_lea.sflag [#allocation3], %s158
          %s160 = sand.u32 %s40, 1
          %s161 = smul.addr %s160, 256
          %s162 = scalar_lea.vmem [#allocation2], %s161
          %s163 = smul.u32 16, %s26
          %s165 = ssub.s32 4096, 4096
          %166 = vsyncadd %s159, %s165
          %s167 = smul.addr %s163, 2
          %s168 = smul.addr %s167, 128
          %s169 = scalar_lea.hbm %s0, %s168
          %s170 = sshll.u32 %s162, 4
          %s171 = int_to_ptr.vmem [resolvable:$true] %s170
          %176 = dma.hbm_to_vmem [thread:$0]  %s169, 4096, %s171, %s159, 256, 256, 16
        $region20: #{tpu_custom_call.1} parent=15 // pred_fallthru
          _
        // Predicated region
        $region21: #{tpu_custom_call.1} parent=15 // pred_check
          %p177 = pneg %p76
        $region22: #{tpu_custom_call.1} parent=15 // pred_check_branch
          %179 = sbr.rel (%p177) target = $region24
        $region23: #{tpu_custom_call.1} parent=15 // pred_region
          %s180 = sand.u32 %s66, 1
          %s181 = scalar_lea.sflag [#allocation6], %s180
          %s182 = sand.u32 %s66, 1
          %s183 = smul.addr %s182, 256
          %s184 = scalar_lea.vmem [#allocation5], %s183
          %s185 = smul.u32 16, %s25
          %s187 = ssub.s32 4096, 4096
          %188 = vsyncadd %s181, %s187
          %s189 = smul.addr %s185, 2
          %s190 = smul.addr %s189, 128
          %s191 = scalar_lea.hbm %s1, %s190
          %s192 = sshll.u32 %s184, 4
          %s193 = int_to_ptr.vmem [resolvable:$true] %s192
          %198 = dma.hbm_to_vmem [thread:$0]  %s191, 4096, %s193, %s181, 256, 256, 16
        $region24: #{tpu_custom_call.1} parent=15 // pred_fallthru
          _
        // Predicated region
        $region25: #{tpu_custom_call.1} parent=15 // pred_check
          %p199 = pneg %p102
        $region26: #{tpu_custom_call.1} parent=15 // pred_check_branch
          %201 = sbr.rel (%p199) target = $region28
        $region27: #{tpu_custom_call.1} parent=15 // pred_region
          %p202 = scmp.lt.s32.totalorder %s25, 1
          %s203 = scalar_select %p202, %s25, 1
          %s204 = scalar_lea.vmem %s2, %s203
        $region28: #{tpu_custom_call.1} parent=15 // pred_fallthru
          _
      $region16: #{tpu_custom_call.1} parent=5 // pred_fallthru
        _
      %p205 = scmp.le.s32.totalorder 1, %s18
      %p206 = scmp.lt.s32.totalorder %s18, 5
      %p207 = pnand %p205, %p206
      %p208 = pneg %p207
      // Predicated region
      $region29: #{tpu_custom_call.1} parent=5 // pred_check
        _
      $region30: #{tpu_custom_call.1} parent=5 // pred_check_branch
        %210 = sbr.rel (%p207) target = $region32
      $region31: #{tpu_custom_call.1} parent=5 // pred_region
        %s211 = ssub.s32 %s18, 1
        %s212 = sand.u32 %s43, 1
        %s213 = scalar_lea.sflag [#allocation3], %s212
        %s214 = sand.u32 %s43, 1
        %s215 = smul.addr %s214, 256
        %s216 = scalar_lea.vmem [#allocation2], %s215
        // Predicated region
        $region33: #{tpu_custom_call.1} parent=31 // pred_check
          %p217 = pneg %p56
        $region34: #{tpu_custom_call.1} parent=31 // pred_check_branch
          %219 = sbr.rel (%p217) target = $region36
        $region35: #{tpu_custom_call.1} parent=31 // pred_region
          %220 = dma.done %s213, 4096
        $region36: #{tpu_custom_call.1} parent=31 // pred_fallthru
          _
        %s221 = sand.u32 %s69, 1
        %s222 = scalar_lea.sflag [#allocation6], %s221
        %s223 = sand.u32 %s69, 1
        %s224 = smul.addr %s223, 256
        %s225 = scalar_lea.vmem [#allocation5], %s224
        // Predicated region
        $region37: #{tpu_custom_call.1} parent=31 // pred_check
          %p226 = pneg %p82
        $region38: #{tpu_custom_call.1} parent=31 // pred_check_branch
          %228 = sbr.rel (%p226) target = $region40
        $region39: #{tpu_custom_call.1} parent=31 // pred_region
          %229 = dma.done %s222, 4096
        $region40: #{tpu_custom_call.1} parent=31 // pred_fallthru
          _
        %s230 = sand.u32 %s43, 1
        %s231 = scalar_lea.sflag [#allocation3], %s230
        %s232 = sand.u32 %s43, 1
        %s233 = smul.addr %s232, 256
        %s234 = scalar_lea.vmem [#allocation2], %s233
        %p235 = pneg %p56
        %p236 = pneg %p53
        %s237 = sand.u32 %s69, 1
        %s238 = scalar_lea.sflag [#allocation6], %s237
        %s239 = sand.u32 %s69, 1
        %s240 = smul.addr %s239, 256
        %s241 = scalar_lea.vmem [#allocation5], %s240
        %p242 = pneg %p82
        %p243 = pneg %p79
        %p244 = scmp.lt.s32.totalorder %s27, 1
        %s245 = scalar_select %p244, %s27, 1
        %s246 = scalar_lea.vmem %s2, %s245
        %p247 = pneg %p108
        %p248 = pneg %p105
        %p249 = pneg %p136
        %p250 = pneg %p133
        %s251 = sand.u32 %s123, 1
        %s252 = scalar_lea.sflag [#allocation4], %s251
        %s253 = sand.u32 %s123, 1
        %s254 = smul.addr %s253, 128
        %s255 = scalar_lea.vmem [#allocation7], %s254
        %s256 = smul.u32 16, %s28
        %s257 = smul.u32 16, %s27
        %p258 = scmp.lt.s32.totalorder %s27, 1
        %s259 = scalar_select %p258, %s27, 1
        %s260 = scalar_lea.vmem %s2, %s259
        %s261 = smul.u32 16, %s28
        %v262 = vld [vmem:[%s216] sm:$0xff]
        %v263 = vld [vmem:[%s216 + $0x8] sm:$0xff]
        %v264 = vld [vmem:[%s216 + $0x10] sm:$0xff]
        %v265 = vld [vmem:[%s216 + $0x18] sm:$0xff]
        %v266 = vld [vmem:[%s216 + $0x20] sm:$0xff]
        %v267 = vld [vmem:[%s216 + $0x28] sm:$0xff]
        %v268 = vld [vmem:[%s216 + $0x30] sm:$0xff]
        %v269 = vld [vmem:[%s216 + $0x38] sm:$0xff]
        %v270 = vld [vmem:[%s216 + $0x40] sm:$0xff]
        %v271 = vld [vmem:[%s216 + $0x48] sm:$0xff]
        %v272 = vld [vmem:[%s216 + $0x50] sm:$0xff]
        %v273 = vld [vmem:[%s216 + $0x58] sm:$0xff]
        %v274 = vld [vmem:[%s216 + $0x60] sm:$0xff]
        %v275 = vld [vmem:[%s216 + $0x68] sm:$0xff]
        %v276 = vld [vmem:[%s216 + $0x70] sm:$0xff]
        %v277 = vld [vmem:[%s216 + $0x78] sm:$0xff]
        %v278 = vld [vmem:[%s216 + $0x80] sm:$0xff]
        %v279 = vld [vmem:[%s216 + $0x88] sm:$0xff]
        %v280 = vld [vmem:[%s216 + $0x90] sm:$0xff]
        %v281 = vld [vmem:[%s216 + $0x98] sm:$0xff]
        %v282 = vld [vmem:[%s216 + $0xa0] sm:$0xff]
        %v283 = vld [vmem:[%s216 + $0xa8] sm:$0xff]
        %v284 = vld [vmem:[%s216 + $0xb0] sm:$0xff]
        %v285 = vld [vmem:[%s216 + $0xb8] sm:$0xff]
        %v286 = vld [vmem:[%s216 + $0xc0] sm:$0xff]
        %v287 = vld [vmem:[%s216 + $0xc8] sm:$0xff]
        %v288 = vld [vmem:[%s216 + $0xd0] sm:$0xff]
        %v289 = vld [vmem:[%s216 + $0xd8] sm:$0xff]
        %v290 = vld [vmem:[%s216 + $0xe0] sm:$0xff]
        %v291 = vld [vmem:[%s216 + $0xe8] sm:$0xff]
        %v292 = vld [vmem:[%s216 + $0xf0] sm:$0xff]
        %v293 = vld [vmem:[%s216 + $0xf8] sm:$0xff]
        %v294 = vld [vmem:[%s225] sm:$0xff]
        %v295 = vld [vmem:[%s225 + $0x8] sm:$0xff]
        %v296 = vld [vmem:[%s225 + $0x10] sm:$0xff]
        %v297 = vld [vmem:[%s225 + $0x18] sm:$0xff]
        %v298 = vld [vmem:[%s225 + $0x20] sm:$0xff]
        %v299 = vld [vmem:[%s225 + $0x28] sm:$0xff]
        %v300 = vld [vmem:[%s225 + $0x30] sm:$0xff]
        %v301 = vld [vmem:[%s225 + $0x38] sm:$0xff]
        %v302 = vld [vmem:[%s225 + $0x40] sm:$0xff]
        %v303 = vld [vmem:[%s225 + $0x48] sm:$0xff]
        %v304 = vld [vmem:[%s225 + $0x50] sm:$0xff]
        %v305 = vld [vmem:[%s225 + $0x58] sm:$0xff]
        %v306 = vld [vmem:[%s225 + $0x60] sm:$0xff]
        %v307 = vld [vmem:[%s225 + $0x68] sm:$0xff]
        %v308 = vld [vmem:[%s225 + $0x70] sm:$0xff]
        %v309 = vld [vmem:[%s225 + $0x78] sm:$0xff]
        %v310 = vld [vmem:[%s225 + $0x80] sm:$0xff]
        %v311 = vld [vmem:[%s225 + $0x88] sm:$0xff]
        %v312 = vld [vmem:[%s225 + $0x90] sm:$0xff]
        %v313 = vld [vmem:[%s225 + $0x98] sm:$0xff]
        %v314 = vld [vmem:[%s225 + $0xa0] sm:$0xff]
        %v315 = vld [vmem:[%s225 + $0xa8] sm:$0xff]
        %v316 = vld [vmem:[%s225 + $0xb0] sm:$0xff]
        %v317 = vld [vmem:[%s225 + $0xb8] sm:$0xff]
        %v318 = vld [vmem:[%s225 + $0xc0] sm:$0xff]
        %v319 = vld [vmem:[%s225 + $0xc8] sm:$0xff]
        %v320 = vld [vmem:[%s225 + $0xd0] sm:$0xff]
        %v321 = vld [vmem:[%s225 + $0xd8] sm:$0xff]
        %v322 = vld [vmem:[%s225 + $0xe0] sm:$0xff]
        %v323 = vld [vmem:[%s225 + $0xe8] sm:$0xff]
        %v324 = vld [vmem:[%s225 + $0xf0] sm:$0xff]
        %v325 = vld [vmem:[%s225 + $0xf8] sm:$0xff]
        %v326 = vld [vmem:[%s260] sm:$0x1]
        %v328 = vlaneseq
        %v329 = vshrl.u32 %v328, 7
        %v330 = vsub.s32 0, %v329
        %v331 = vrot.slane %v326, %v330
        %333 = vmatprep.subr.mxu0 %v295
        %334 = vmatpush1.xpose.msra.mxu0 %v294
        %335 = vmatprep.subr.mxu0 %v297
        %336 = vmatpush1.xpose.msra.mxu0 %v296
        %337 = vmatprep.subr.mxu0 %v299
        %338 = vmatpush1.xpose.msra.mxu0 %v298
        %339 = vmatprep.subr.mxu0 %v301
        %340 = vmatpush1.xpose.msra.mxu0 %v300
        %341 = vmatprep.subr.mxu0 %v303
        %342 = vmatpush1.xpose.msra.mxu0 %v302
        %343 = vmatprep.subr.mxu0 %v305
        %344 = vmatpush1.xpose.msra.mxu0 %v304
        %345 = vmatprep.subr.mxu0 %v307
        %346 = vmatpush1.xpose.msra.mxu0 %v306
        %347 = vmatprep.subr.mxu0 %v309
        %348 = vmatpush1.xpose.msra.mxu0 %v308
        %349 = vmatprep.subr.mxu0 %v311
        %350 = vmatpush1.xpose.msra.mxu0 %v310
        %351 = vmatprep.subr.mxu0 %v313
        %352 = vmatpush1.xpose.msra.mxu0 %v312
        %353 = vmatprep.subr.mxu0 %v315
        %354 = vmatpush1.xpose.msra.mxu0 %v314
        %355 = vmatprep.subr.mxu0 %v317
        %356 = vmatpush1.xpose.msra.mxu0 %v316
        %357 = vmatprep.subr.mxu0 %v319
        %358 = vmatpush1.xpose.msra.mxu0 %v318
        %359 = vmatprep.subr.mxu0 %v321
        %360 = vmatpush1.xpose.msra.mxu0 %v320
        %361 = vmatprep.subr.mxu0 %v323
        %362 = vmatpush1.xpose.msra.mxu0 %v322
        %363 = vmatprep.subr.mxu0 %v325
        %364 = vmatpush1.xpose.msra.mxu0 %v324
        %365 = vmatprep.subr.mxu0 0.0
        %366 = vmatpush1.xpose.msra.mxu0 0.0
        %367 = vmatprep.subr.mxu0 0.0
        %368 = vmatpush1.xpose.msra.mxu0 0.0
        %369 = vmatprep.subr.mxu0 0.0
        %370 = vmatpush1.xpose.msra.mxu0 0.0
        %371 = vmatprep.subr.mxu0 0.0
        %372 = vmatpush1.xpose.msra.mxu0 0.0
        %373 = vmatprep.subr.mxu0 0.0
        %374 = vmatpush1.xpose.msra.mxu0 0.0
        %375 = vmatprep.subr.mxu0 0.0
        %376 = vmatpush1.xpose.msra.mxu0 0.0
        %377 = vmatprep.subr.mxu0 0.0
        %378 = vmatpush1.xpose.msra.mxu0 0.0
        %379 = vmatprep.subr.mxu0 0.0
        %380 = vmatpush1.xpose.msra.mxu0 0.0
        %381 = vmatprep.subr.mxu0 0.0
        %382 = vmatpush1.xpose.msra.mxu0 0.0
        %383 = vmatprep.subr.mxu0 0.0
        %384 = vmatpush1.xpose.msra.mxu0 0.0
        %385 = vmatprep.subr.mxu0 0.0
        %386 = vmatpush1.xpose.msra.mxu0 0.0
        %387 = vmatprep.subr.mxu0 0.0
        %388 = vmatpush1.xpose.msra.mxu0 0.0
        %389 = vmatprep.subr.mxu0 0.0
        %390 = vmatpush1.xpose.msra.mxu0 0.0
        %391 = vmatprep.subr.mxu0 0.0
        %392 = vmatpush1.xpose.msra.mxu0 0.0
        %393 = vmatprep.subr.mxu0 0.0
        %394 = vmatpush1.xpose.msra.mxu0 0.0
        %395 = vmatprep.subr.mxu0 0.0
        %396 = vmatpush1.xpose.msra.mxu0 0.0
        %397 = vmatprep.mubr.f32.mxu0 %v263
        %398 = vmatmul.mubr.f32.gmra.mrb[0].mxu0 %v262
        %v399 = vpop.f32.mrb[0].mxu0
        %v400 = vadd.f32 %v331, %v399
        %v401 = vpop.f32.mrb[0].mxu0
        %402 = vmatprep.mubr.f32.mxu0 %v265
        %403 = vmatmul.mubr.f32.gmra.mrb[0].mxu0 %v264
        %v404 = vpop.f32.mrb[0].mxu0
        %v405 = vadd.f32 %v331, %v404
        %v406 = vpop.f32.mrb[0].mxu0
        %407 = vmatprep.mubr.f32.mxu0 %v267
        %408 = vmatmul.mubr.f32.gmra.mrb[0].mxu0 %v266
        %v409 = vpop.f32.mrb[0].mxu0
        %v410 = vadd.f32 %v331, %v409
        %v411 = vpop.f32.mrb[0].mxu0
        %412 = vmatprep.mubr.f32.mxu0 %v269
        %413 = vmatmul.mubr.f32.gmra.mrb[0].mxu0 %v268
        %v414 = vpop.f32.mrb[0].mxu0
        %v415 = vadd.f32 %v331, %v414
        %v416 = vpop.f32.mrb[0].mxu0
        %417 = vmatprep.mubr.f32.mxu0 %v271
        %418 = vmatmul.mubr.f32.gmra.mrb[0].mxu0 %v270
        %v419 = vpop.f32.mrb[0].mxu0
        %v420 = vadd.f32 %v331, %v419
        %v421 = vpop.f32.mrb[0].mxu0
        %422 = vmatprep.mubr.f32.mxu0 %v273
        %423 = vmatmul.mubr.f32.gmra.mrb[0].mxu0 %v272
        %v424 = vpop.f32.mrb[0].mxu0
        %v425 = vadd.f32 %v331, %v424
        %v426 = vpop.f32.mrb[0].mxu0
        %427 = vmatprep.mubr.f32.mxu0 %v275
        %428 = vmatmul.mubr.f32.gmra.mrb[0].mxu0 %v274
        %v429 = vpop.f32.mrb[0].mxu0
        %v430 = vadd.f32 %v331, %v429
        %v431 = vpop.f32.mrb[0].mxu0
        %432 = vmatprep.mubr.f32.mxu0 %v277
        %433 = vmatmul.mubr.f32.gmra.mrb[0].mxu0 %v276
        %v434 = vpop.f32.mrb[0].mxu0
        %v435 = vadd.f32 %v331, %v434
        %v436 = vpop.f32.mrb[0].mxu0
        %437 = vmatprep.mubr.f32.mxu0 %v279
        %438 = vmatmul.mubr.f32.gmra.mrb[0].mxu0 %v278
        %v439 = vpop.f32.mrb[0].mxu0
        %v440 = vadd.f32 %v331, %v439
        %v441 = vpop.f32.mrb[0].mxu0
        %442 = vmatprep.mubr.f32.mxu0 %v281
        %443 = vmatmul.mubr.f32.gmra.mrb[0].mxu0 %v280
        %v444 = vpop.f32.mrb[0].mxu0
        %v445 = vadd.f32 %v331, %v444
        %v446 = vpop.f32.mrb[0].mxu0
        %447 = vmatprep.mubr.f32.mxu0 %v283
        %448 = vmatmul.mubr.f32.gmra.mrb[0].mxu0 %v282
        %v449 = vpop.f32.mrb[0].mxu0
        %v450 = vadd.f32 %v331, %v449
        %v451 = vpop.f32.mrb[0].mxu0
        %452 = vmatprep.mubr.f32.mxu0 %v285
        %453 = vmatmul.mubr.f32.gmra.mrb[0].mxu0 %v284
        %v454 = vpop.f32.mrb[0].mxu0
        %v455 = vadd.f32 %v331, %v454
        %v456 = vpop.f32.mrb[0].mxu0
        %457 = vmatprep.mubr.f32.mxu0 %v287
        %458 = vmatmul.mubr.f32.gmra.mrb[0].mxu0 %v286
        %v459 = vpop.f32.mrb[0].mxu0
        %v460 = vadd.f32 %v331, %v459
        %v461 = vpop.f32.mrb[0].mxu0
        %462 = vmatprep.mubr.f32.mxu0 %v289
        %463 = vmatmul.mubr.f32.gmra.mrb[0].mxu0 %v288
        %v464 = vpop.f32.mrb[0].mxu0
        %v465 = vadd.f32 %v331, %v464
        %v466 = vpop.f32.mrb[0].mxu0
        %467 = vmatprep.mubr.f32.mxu0 %v291
        %468 = vmatmul.mubr.f32.gmra.mrb[0].mxu0 %v290
        %v469 = vpop.f32.mrb[0].mxu0
        %v470 = vadd.f32 %v331, %v469
        %v471 = vpop.f32.mrb[0].mxu0
        %472 = vmatprep.mubr.f32.mxu0 %v293
        %473 = vmatmul.mubr.f32.gmra.mrb[0].mxu0 %v292
        %v474 = vpop.f32.mrb[0].mxu0
        %v475 = vadd.f32 %v331, %v474
        %v476 = vpop.f32.mrb[0].mxu0
        %477 = vdwg.mxu0
        %v478 = vtanh.pop %v400
        %v479 = vtanh.pop %v405
        %v480 = vtanh.pop %v410
        %v481 = vtanh.pop %v415
        %v482 = vtanh.pop %v420
        %v483 = vtanh.pop %v425
        %v484 = vtanh.pop %v430
        %v485 = vtanh.pop %v435
        %v486 = vtanh.pop %v440
        %v487 = vtanh.pop %v445
        %v488 = vtanh.pop %v450
        %v489 = vtanh.pop %v455
        %v490 = vtanh.pop %v460
        %v491 = vtanh.pop %v465
        %v492 = vtanh.pop %v470
        %v493 = vtanh.pop %v475
        %494 = vst [vmem:[%s255] sm:$0xff] %v478
        %495 = vst [vmem:[%s255 + $0x8] sm:$0xff] %v479
        %496 = vst [vmem:[%s255 + $0x10] sm:$0xff] %v480
        %497 = vst [vmem:[%s255 + $0x18] sm:$0xff] %v481
        %498 = vst [vmem:[%s255 + $0x20] sm:$0xff] %v482
        %499 = vst [vmem:[%s255 + $0x28] sm:$0xff] %v483
        %500 = vst [vmem:[%s255 + $0x30] sm:$0xff] %v484
        %501 = vst [vmem:[%s255 + $0x38] sm:$0xff] %v485
        %502 = vst [vmem:[%s255 + $0x40] sm:$0xff] %v486
        %503 = vst [vmem:[%s255 + $0x48] sm:$0xff] %v487
        %504 = vst [vmem:[%s255 + $0x50] sm:$0xff] %v488
        %505 = vst [vmem:[%s255 + $0x58] sm:$0xff] %v489
        %506 = vst [vmem:[%s255 + $0x60] sm:$0xff] %v490
        %507 = vst [vmem:[%s255 + $0x68] sm:$0xff] %v491
        %508 = vst [vmem:[%s255 + $0x70] sm:$0xff] %v492
        %509 = vst [vmem:[%s255 + $0x78] sm:$0xff] %v493
        %s510 = sand.u32 %s123, 1
        %s511 = scalar_lea.sflag [#allocation4], %s510
        %s512 = sand.u32 %s123, 1
        %s513 = smul.addr %s512, 128
        %s514 = scalar_lea.vmem [#allocation7], %s513
        // Predicated region
        $region41: #{tpu_custom_call.1} parent=31 // pred_check
          %p515 = pneg %p133
        $region42: #{tpu_custom_call.1} parent=31 // pred_check_branch
          %517 = sbr.rel (%p515) target = $region44
        $region43: #{tpu_custom_call.1} parent=31 // pred_region
          %s518 = smul.u32 16, %s28
          %s520 = ssub.s32 2048, 2048
          %521 = vsyncadd %s511, %s520
          %s522 = smul.addr %s518, 2
          %s523 = sadd.s32 %s27, %s522
          %s524 = smul.addr %s523, 128
          %s525 = scalar_lea.hbm %s3, %s524
          %s526 = sshll.u32 %s514, 4
          %s527 = int_to_ptr.vmem [resolvable:$true] %s526
          %532 = dma.vmem_to_hbm [thread:$0]  %s527, 2048, %s525, %s511, 128, 256, 8
        $region44: #{tpu_custom_call.1} parent=31 // pred_fallthru
          _
      $region32: #{tpu_custom_call.1} parent=5 // pred_fallthru
        _
      %p533 = scmp.le.s32.totalorder 2, %s18
      // Predicated region
      $region45: #{tpu_custom_call.1} parent=5 // pred_check
        %p534 = pneg %p533
      $region46: #{tpu_custom_call.1} parent=5 // pred_check_branch
        %536 = sbr.rel (%p534) target = $region48
      $region47: #{tpu_custom_call.1} parent=5 // pred_region
        %s537 = ssub.s32 %s18, 2
        // Predicated region
        $region49: #{tpu_custom_call.1} parent=47 // pred_check
          %p538 = pneg %p139
        $region50: #{tpu_custom_call.1} parent=47 // pred_check_branch
          %540 = sbr.rel (%p538) target = $region52
        $region51: #{tpu_custom_call.1} parent=47 // pred_region
          %s541 = sand.u32 %s124, 1
          %s542 = scalar_lea.sflag [#allocation4], %s541
          %s543 = sand.u32 %s124, 1
          %s544 = smul.addr %s543, 128
          %s545 = scalar_lea.vmem [#allocation7], %s544
          %546 = dma.done %s542, 2048
        $region52: #{tpu_custom_call.1} parent=47 // pred_fallthru
          _
      $region48: #{tpu_custom_call.1} parent=5 // pred_fallthru
        _
    $region6: #{tpu_custom_call.1} parent=1 // loop_footer
      %s22 = sadd.s32 1, %s18
    $region7: #{tpu_custom_call.1} parent=1 // loop_footer_branch
      %17 = sbr.rel target = $region3
    $region8: #{tpu_custom_call.1} parent=1 // loop_exit
      _
    %547 = vsyncpa [#allocation3], 1
    %s548 = scalar_lea.sflag [#allocation3], 1
    %549 = vsyncpa %s548, 1
    %550 = vsyncpa [#allocation6], 1
    %s551 = scalar_lea.sflag [#allocation6], 1
    %552 = vsyncpa %s551, 1
    %553 = vsyncpa [#allocation4], 1
    %s554 = scalar_lea.sflag [#allocation4], 1
    %555 = vsyncpa %s554, 1

</llo_original>
